<compile_context>
chip_gen: v5e
topology: v5e:2x2
jax: 0.10.0
libtpu: 0.0.40
codegen_flags: <defaults>
</compile_context>

<pallas_src>
import math

import jax
import jax.numpy as jnp
from jax.experimental import pallas as pl
from jax.experimental.pallas import tpu as pltpu


def _bias_kernel(x_ref, w_ref, b_ref, o_ref):
    # Elementwise hot path: broadcast-add weight then bias (PyTorch order).
    o_ref[...] = x_ref[...] + w_ref[...] + b_ref[...]


def _round_up(x: int, m: int) -> int:
    return ((x + m - 1) // m) * m


def _choose_row_tile(rows: int, size: int, itemsize: int, sublane: int, *,
                     target_tile_bytes: int = 2 << 20,
                     vmem_budget_bytes: int = 12 << 20,
                     min_steps: int = 8) -> int:
    """Pick a row tile.

    * bytes-based: ~2 MiB per input tile (double-buffered in + out tiles
      => ~8 MiB total, safe under v5e's 16 MiB scoped-VMEM default and well
      under v6e/v7x limits -- no vmem_limit_bytes override needed).
    * aim for >= `min_steps` grid steps when rows permit so v7x's two
      TensorCores each get a pipelined stream of blocks.
    * tile is a multiple of the dtype-aware sublane pack and never larger
      than the sublane-floored row count (trailing block may be partial).
    """
    if rows <= sublane:
        return max(rows, 1)  # single block equal to the full (tiny) row extent
    bytes_per_row = max(size * itemsize, 1)
    tile = max(sublane, target_tile_bytes // bytes_per_row)
    tile = min(tile, max(sublane, vmem_budget_bytes // (4 * bytes_per_row)))
    if rows >= min_steps * sublane:
        tile = min(tile, _round_up(pl.cdiv(rows, min_steps), sublane))
    tile = min(tile, (rows // sublane) * sublane)
    return max(sublane, (tile // sublane) * sublane)


def bias_module_forward(x: jax.Array, weight: jax.Array, bias: jax.Array,
                        *, row_tile: int | None = None,
                        donate_x: bool = False) -> jax.Array:
    """Computes (x + weight) + bias with a Pallas TPU kernel.

    x:      (..., size)  -- arbitrary leading dims, trailing dim = size
    weight: (size,)
    bias:   (size,)

    donate_x: alias the output onto x's buffer.  Only saves HBM if the caller
    actually donates x at the jit boundary; otherwise XLA inserts a copy.
    """
    size = x.shape[-1]
    assert weight.shape == (size,) and bias.shape == (size,)

    lead_shape = x.shape[:-1]
    rows = math.prod(lead_shape) if lead_shape else 1

    # Degenerate shapes: nothing to do on-device.
    if rows == 0 or size == 0:
        return x + weight.astype(x.dtype) + bias.astype(x.dtype)

    w = weight.astype(x.dtype)
    b = bias.astype(x.dtype)
    x2d = x.reshape(rows, size)
    fsize = size

    # Lane-dense folding: for small feature dims that divide 128, fold rows
    # into the lane axis so stores are unmasked (biggest store-path lever).
    if 0 < size < 128 and 128 % size == 0:
        k = 128 // size
        if k > 1 and rows % k == 0:
            x2d = x2d.reshape(rows // k, k * size)
            w = jnp.tile(w, k)
            b = jnp.tile(b, k)
            fsize = k * size
    eff_rows = x2d.shape[0]
    w2 = w.reshape(1, fsize)
    b2 = b.reshape(1, fsize)

    itemsize = jnp.dtype(x.dtype).itemsize
    # Packed-sublane multiple: 8 (f32) / 16 (bf16) / 32 (int8, fp8).
    sublane = max(8, 32 // max(itemsize, 1))

    if row_tile is not None:
        if eff_rows <= sublane:
            tile = eff_rows
        else:
            tile = max(sublane, (min(row_tile, eff_rows) // sublane) * sublane)
    else:
        tile = _choose_row_tile(eff_rows, fsize, itemsize, sublane)

    grid = (pl.cdiv(eff_rows, tile),)

    kwargs = {}
    if donate_x:
        kwargs["input_output_aliases"] = {0: 0}

    y2d = pl.pallas_call(
        _bias_kernel,
        out_shape=jax.ShapeDtypeStruct((eff_rows, fsize), x.dtype),
        grid_spec=pltpu.PrefetchScalarGridSpec(
            num_scalar_prefetch=0,
            grid=grid,
            in_specs=[
                pl.BlockSpec((tile, fsize), lambda i: (i, 0)),
                pl.BlockSpec((1, fsize), lambda i: (0, 0)),
                pl.BlockSpec((1, fsize), lambda i: (0, 0)),
            ],
            out_specs=pl.BlockSpec((tile, fsize), lambda i: (i, 0)),
        ),
        compiler_params=pltpu.CompilerParams(
            dimension_semantics=("parallel",)),
        **kwargs,
    )(x2d, w2, b2)

    return y2d.reshape(*lead_shape, size)


if __name__ == "__main__":
    # Small shapes consistent with the module: batch=2, seq=8, size=128.
    batch, seq, size = 2, 8, 128
    key = jax.random.PRNGKey(0)
    kx, kw, kb = jax.random.split(key, 3)

    x = jax.random.normal(kx, (batch, seq, size), dtype=jnp.float32)
    # PyTorch init is zeros; use small nonzero values so the broadcast-add is
    # actually exercised.
    weight = 0.01 * jax.random.normal(kw, (size,), dtype=jnp.float32)
    bias = 0.01 * jax.random.normal(kb, (size,), dtype=jnp.float32)

    y = bias_module_forward(x, weight, bias)
    jax.block_until_ready(y)
    assert y.shape == x.shape
    assert jnp.allclose(y, x + weight + bias, atol=1e-6), "mismatch vs reference"

    # Ragged row count (3*5 = 15 rows): exercises the partial trailing block
    # path (no full-array pad / slice).
    x_r = jax.random.normal(kx, (3, 5, size), dtype=jnp.float32)
    y_r = bias_module_forward(x_r, weight, bias)
    jax.block_until_ready(y_r)
    assert jnp.allclose(y_r, x_r + weight + bias, atol=1e-6), "ragged mismatch"

    # Sub-128 feature dim (64): exercises the lane-dense row-folding path.
    size2 = 64
    w_s = 0.01 * jax.random.normal(kw, (size2,), dtype=jnp.float32)
    b_s = 0.01 * jax.random.normal(kb, (size2,), dtype=jnp.float32)
    x_s = jax.random.normal(kx, (2, 8, size2), dtype=jnp.float32)
    y_s = bias_module_forward(x_s, w_s, b_s)
    jax.block_until_ready(y_s)
    assert jnp.allclose(y_s, x_s + w_s + b_s, atol=1e-6), "folded mismatch"

    print("KERNEL_OK")
</pallas_src>

<mosaic_0001>
module attributes {stable_mosaic.version = 11 : i64} {
  func.func @_bias_kernel(%arg0: i32, %arg1: memref<16x128xf32, #tpu.memory_space<vmem>>, %arg2: memref<1x128xf32, #tpu.memory_space<vmem>>, %arg3: memref<1x128xf32, #tpu.memory_space<vmem>>, %arg4: memref<16x128xf32, #tpu.memory_space<vmem>>) attributes {dimension_semantics = [#tpu.dimension_semantics<parallel>], iteration_bounds = array<i64: 1>, scalar_prefetch = 0 : i64, scratch_operands = 0 : i64, tpu.core_type = #tpu.core_type<tc>, window_params = [{transform_indices = @transform_0, window_bounds = array<i64: 16, 128>}, {pipeline_mode = #tpu.pipeline_mode<synchronous>, transform_indices = @transform_1, window_bounds = array<i64: 1, 128>}, {pipeline_mode = #tpu.pipeline_mode<synchronous>, transform_indices = @transform_2, window_bounds = array<i64: 1, 128>}, {transform_indices = @transform_3, window_bounds = array<i64: 16, 128>}]} {
    %c0 = arith.constant 0 : index
    %c0_0 = arith.constant 0 : index
    %0 = vector.load %arg1[%c0, %c0_0] : memref<16x128xf32, #tpu.memory_space<vmem>>, vector<16x128xf32>
    %c0_1 = arith.constant 0 : index
    %c0_2 = arith.constant 0 : index
    %1 = vector.load %arg2[%c0_1, %c0_2] : memref<1x128xf32, #tpu.memory_space<vmem>>, vector<1x128xf32>
    %2 = vector.broadcast %1 : vector<1x128xf32> to vector<16x128xf32>
    %3 = arith.addf %0, %2 : vector<16x128xf32>
    %c0_3 = arith.constant 0 : index
    %c0_4 = arith.constant 0 : index
    %4 = vector.load %arg3[%c0_3, %c0_4] : memref<1x128xf32, #tpu.memory_space<vmem>>, vector<1x128xf32>
    %5 = vector.broadcast %4 : vector<1x128xf32> to vector<16x128xf32>
    %6 = arith.addf %3, %5 : vector<16x128xf32>
    %c0_5 = arith.constant 0 : index
    %c0_6 = arith.constant 0 : index
    %7 = vector.load %arg4[%c0_5, %c0_6] : memref<16x128xf32, #tpu.memory_space<vmem>>, vector<16x128xf32>
    tpu.vector_store %arg4[%c0_5, %c0_6], %6 {strides = array<i32>} : memref<16x128xf32, #tpu.memory_space<vmem>>, vector<16x128xf32>,
    return
  }
  func.func @transform_0(%arg0: i32) -> (i32, i32) {
    %c0_i32 = arith.constant 0 : i32
    %c0_i32_0 = arith.constant 0 : i32
    return %arg0, %c0_i32 : i32, i32
  }
  func.func @transform_1(%arg0: i32) -> (i32, i32) {
    %c0_i32 = arith.constant 0 : i32
    %c0_i32_0 = arith.constant 0 : i32
    %c0_i32_1 = arith.constant 0 : i32
    return %c0_i32, %c0_i32_0 : i32, i32
  }
  func.func @transform_2(%arg0: i32) -> (i32, i32) {
    %c0_i32 = arith.constant 0 : i32
    %c0_i32_0 = arith.constant 0 : i32
    %c0_i32_1 = arith.constant 0 : i32
    return %c0_i32, %c0_i32_0 : i32, i32
  }
  func.func @transform_3(%arg0: i32) -> (i32, i32) {
    %c0_i32 = arith.constant 0 : i32
    %c0_i32_0 = arith.constant 0 : i32
    return %arg0, %c0_i32 : i32, i32
  }
}

</mosaic_0001>

<llo_original>
// kernel: tpu_custom_call.1
$region0: #{tpu_custom_call.1}
  #allocation0 [shape = 'u32[]', space=smem, size = 0x4, offset = 0x4, fixed_abs, tag = 'smem constant byte address 0x4 - core index']
  #allocation1 [shape = 'u32[72,128]{1,0:T(1,128)}', space=vmem, size = 0x9000, scoped, tag = 'internal scratch']
  %s0 = inlined_call_operand.hbm [shape: f32[16,128], index: 0, kind: input, shape index: {}]
  %s1 = inlined_call_operand.hbm [shape: f32[1,128], index: 1, kind: input, shape index: {}]
  %s2 = inlined_call_operand.vmem [shape: f32[1,128], index: 2, kind: input, shape index: {}]
  %s3 = inlined_call_operand.hbm [shape: f32[16,128], index: 3, kind: output, shape index: {}]
  %s4 = sld [smem:[#allocation0]]
  $region30: #{tpu_custom_call.1} parent=0
    _
  %s6 = ssub.s32 1, %s4
  %s7 = scalar_select 0, %s6, %s4
  $region1: #{tpu_custom_call.1} parent=0
    #allocation2 [shape = 'u8[8192]{0}', space=vmem, size = 0x2000, scoped, tag = 'input window, operand 0, single buffered']
    #allocation3 [shape = 's32[1]{0}', space=sflag, size = 0x4, scoped, tag = 'scoped memory for tpu_custom_call.1']
    #allocation4 [shape = 's32[1]{0}', space=sflag, size = 0x4, scoped, tag = 'scoped memory for tpu_custom_call.1']
    #allocation5 [shape = 'u8[512]{0}', space=vmem, size = 0x400, scoped, tag = 'input window, operand 1, single buffered']
    #allocation6 [shape = 's32[1]{0}', space=sflag, size = 0x4, scoped, tag = 'scoped memory for tpu_custom_call.1']
    #allocation7 [shape = 'u8[8192]{0}', space=vmem, size = 0x2000, scoped, tag = 'output window, operand 0, single buffered']
    %8 = vsyncpa [#allocation3], 0
    %9 = vsyncpa [#allocation6], 0
    %10 = vsyncpa [#allocation4], 0
    // Predicated region
    $region2: #{tpu_custom_call.1} parent=1 // pred_check
      _
    $region3: #{tpu_custom_call.1} parent=1 // pred_check_branch
      %12 = sbr.rel (0) target = $region5
    $region4: #{tpu_custom_call.1} parent=1 // pred_region
      %14 = vsyncadd [#allocation3], 0
      %s15 = sshll.u32 %s0, 4
      %s16 = int_to_ptr.hbm [resolvable:$true] %s15
      %s17 = sshll.u32 [#allocation2], 4
      %s18 = int_to_ptr.vmem [resolvable:$true] %s17
      %23 = dma.hbm_to_vmem [thread:$0]  %s16, 256, %s18, [#allocation3], 128, 128, 8
    $region5: #{tpu_custom_call.1} parent=1 // pred_fallthru
      _
    // Predicated region
    $region6: #{tpu_custom_call.1} parent=1 // pred_check
      _
    $region7: #{tpu_custom_call.1} parent=1 // pred_check_branch
      %25 = sbr.rel (0) target = $region9
    $region8: #{tpu_custom_call.1} parent=1 // pred_region
      %27 = vsyncadd [#allocation6], 0
      %s29 = sshll.u32 %s1, 4
      %s30 = int_to_ptr.hbm [resolvable:$true] %s29
      %s31 = sshll.u32 [#allocation5], 4
      %s32 = int_to_ptr.vmem [resolvable:$true] %s31
      %34 = dma.hbm_to_vmem [thread:$0]  %s30, 16, %s32, [#allocation6]
    $region9: #{tpu_custom_call.1} parent=1 // pred_fallthru
      _
    // Predicated region
    $region10: #{tpu_custom_call.1} parent=1 // pred_check
      _
    $region11: #{tpu_custom_call.1} parent=1 // pred_check_branch
      %36 = sbr.rel (0) target = $region13
    $region12: #{tpu_custom_call.1} parent=1 // pred_region
      _
    $region13: #{tpu_custom_call.1} parent=1 // pred_fallthru
      _
    // Predicated region
    $region14: #{tpu_custom_call.1} parent=1 // pred_check
      _
    $region15: #{tpu_custom_call.1} parent=1 // pred_check_branch
      %38 = sbr.rel (0) target = $region17
    $region16: #{tpu_custom_call.1} parent=1 // pred_region
      %40 = dma.done [#allocation3], 256
    $region17: #{tpu_custom_call.1} parent=1 // pred_fallthru
      _
    // Predicated region
    $region18: #{tpu_custom_call.1} parent=1 // pred_check
      _
    $region19: #{tpu_custom_call.1} parent=1 // pred_check_branch
      %42 = sbr.rel (0) target = $region21
    $region20: #{tpu_custom_call.1} parent=1 // pred_region
      %44 = dma.done [#allocation6], 16
    $region21: #{tpu_custom_call.1} parent=1 // pred_fallthru
      _
    %v45 = vld [vmem:[#allocation2] sm:$0xff]
    %v46 = vld [vmem:[#allocation2 + $0x8] sm:$0xff]
    %v47 = vld [vmem:[#allocation5] sm:$0x1]
    %v49 = vperm.slane %v47, 0
    %v51 = vadd.f32 %v45, %v49
    %v52 = vadd.f32 %v46, %v49
    %v53 = vld [vmem:[%s2] sm:$0x1]
    %v55 = vperm.slane %v53, 0
    %v57 = vadd.f32 %v51, %v55
    %v58 = vadd.f32 %v52, %v55
    %59 = vst [vmem:[#allocation7] sm:$0xff] %v57
    %60 = vst [vmem:[#allocation7 + $0x8] sm:$0xff] %v58
    // Predicated region
    $region22: #{tpu_custom_call.1} parent=1 // pred_check
      _
    $region23: #{tpu_custom_call.1} parent=1 // pred_check_branch
      %62 = sbr.rel (0) target = $region25
    $region24: #{tpu_custom_call.1} parent=1 // pred_region
      %64 = vsyncadd [#allocation4], 0
      %s65 = sshll.u32 [#allocation7], 4
      %s66 = int_to_ptr.vmem [resolvable:$true] %s65
      %s67 = sshll.u32 %s3, 4
      %s68 = int_to_ptr.hbm [resolvable:$true] %s67
      %73 = dma.vmem_to_hbm [thread:$0]  %s66, 256, %s68, [#allocation4], 128, 128, 8
    $region25: #{tpu_custom_call.1} parent=1 // pred_fallthru
      _
    // Predicated region
    $region26: #{tpu_custom_call.1} parent=1 // pred_check
      _
    $region27: #{tpu_custom_call.1} parent=1 // pred_check_branch
      %75 = sbr.rel (0) target = $region29
    $region28: #{tpu_custom_call.1} parent=1 // pred_region
      %77 = dma.done [#allocation4], 256
    $region29: #{tpu_custom_call.1} parent=1 // pred_fallthru
      _
    %78 = vsyncpa [#allocation3], 1
    %79 = vsyncpa [#allocation6], 1
    %80 = vsyncpa [#allocation4], 1

</llo_original>
